<compile_context>
chip_gen: v6e
topology: v6e:2x2x1
jax: 0.10.0
libtpu: 0.0.40
codegen_flags: <defaults>
</compile_context>

<pallas_src>
import jax
import jax.numpy as jnp
from jax.experimental import pallas as pl
from jax.experimental.pallas import tpu as pltpu


def _round_up(x, m):
    return (x + m - 1) // m * m


def _cdiv(a, b):
    return -(-a // b)


# ---------------------------------------------------------------------------
# Kernel
# ---------------------------------------------------------------------------
def _combiner_kernel(z_ref, hl_ref, hr_ref,
                     w1_ref, b1_ref,
                     wmu_ref, bmu_ref,
                     wsg_ref, bsg_ref,
                     mu_ref, sigma_ref):
    mxu_dt = w1_ref.dtype  # f32 (bit-faithful) or bf16 (v6e/v7x fast path)

    # lin_z_to_hidden + tanh, combined with the two RNN hidden states (f32).
    pre_h = jnp.dot(z_ref[...].astype(mxu_dt), w1_ref[...],
                    preferred_element_type=jnp.float32) + b1_ref[...]
    h = (1.0 / 3.0) * (jnp.tanh(pre_h) + hl_ref[...] + hr_ref[...])
    h_mxu = h.astype(mxu_dt)

    # Two MXU dots sharing the resident h_combined (kernel is not MXU-bound).
    mu = jnp.dot(h_mxu, wmu_ref[...],
                 preferred_element_type=jnp.float32) + bmu_ref[...]
    sg = jnp.dot(h_mxu, wsg_ref[...],
                 preferred_element_type=jnp.float32) + bsg_ref[...]

    mu_ref[...] = mu.astype(mu_ref.dtype)
    # softplus == logaddexp(x, 0); exp/log ride the EUP slot.
    sigma_ref[...] = jnp.logaddexp(sg, 0.0).astype(sigma_ref.dtype)


# ---------------------------------------------------------------------------
# One-time weight prep (hoisted out of the per-call path)
# ---------------------------------------------------------------------------
def prepack_params(params, mxu_dtype=jnp.float32):
    """Weights are stored (in, out) for `x @ W + b`.  NOTE: PyTorch nn.Linear
    keeps weight as (out, in) -- transpose when importing a real checkpoint.
    Only the MXU operands (weights) are cast; biases stay f32."""
    f32 = jnp.float32
    return {
        "w1": jnp.asarray(params["w1"], mxu_dtype),
        "w_mu": jnp.asarray(params["w_mu"], mxu_dtype),
        "w_sigma": jnp.asarray(params["w_sigma"], mxu_dtype),
        "b1": jnp.asarray(params["b1"], f32).reshape(1, -1),
        "b_mu": jnp.asarray(params["b_mu"], f32).reshape(1, -1),
        "b_sigma": jnp.asarray(params["b_sigma"], f32).reshape(1, -1),
    }


# ---------------------------------------------------------------------------
# Row-tiling selection
# ---------------------------------------------------------------------------
def _choose_row_tiling(B, L, C, weight_bytes, max_row_tile, vmem_budget):
    """Pick (TB, nsteps, padded_rows, vmem_estimate): per-step VMEM fits the
    budget, row padding waste <= one 8-row group per tile, and the grid has
    >= 2 steps when possible (so v7x's two TensorCores both participate)."""
    def est_vmem(tb):
        stream = tb * (L + 2 * C) * 4 + 2 * tb * L * 4   # in + out tiles (f32)
        scratch = tb * (C + 2 * L) * 4                   # h + pre-act slabs
        return 2 * stream + 2 * weight_bytes + scratch   # x2 = double buffers

    tb_cap = max(8, _round_up(max_row_tile, 8))
    while est_vmem(tb_cap) > vmem_budget and tb_cap > 8:
        tb_cap = max(8, _round_up(tb_cap // 2, 8))

    if B % 8 != 0 and B <= tb_cap:
        # Single full-batch tile (block dim == full array dim): no row pad.
        return B, 1, B, est_vmem(B)

    B8 = _round_up(B, 8)
    nsteps = _cdiv(B8, tb_cap)
    if nsteps == 1 and B8 >= 16:
        nsteps = 2                       # give the 2nd TensorCore work (v7x)
    TB = _round_up(_cdiv(B8, nsteps), 8)
    nsteps = _cdiv(B8, TB)
    return TB, nsteps, TB * nsteps, est_vmem(TB)


# ---------------------------------------------------------------------------
# Forward wrapper
# ---------------------------------------------------------------------------
def combiner_forward(z_t_1, h_l_rnn, h_r_rnn, packed, *, max_row_tile=1024):
    f32 = jnp.float32
    B, L = z_t_1.shape
    C = h_l_rnn.shape[1]

    wt_isz = jnp.dtype(packed["w1"].dtype).itemsize
    weight_bytes = (L * C + 2 * C * L) * wt_isz + (C + 2 * L) * 4

    TB, nsteps, Bp, vmem_est = _choose_row_tiling(
        B, L, C, weight_bytes, max_row_tile, vmem_budget=28 << 20)

    def pad_rows(x):
        x = x.astype(f32)
        return x if Bp == B else jnp.pad(x, ((0, Bp - B), (0, 0)))

    z, hl, hr = pad_rows(z_t_1), pad_rows(h_l_rnn), pad_rows(h_r_rnn)

    def row(cols):                       # streamed over the batch grid axis
        return pl.BlockSpec((TB, cols), lambda i: (i, 0))

    def res(a):                          # same block every step -> resident
        return pl.BlockSpec(a.shape, lambda i: (0, 0))

    # TODO(synk): if a trace shows exposed output writeback at large TB, set
    # pipeline_mode=pl.Buffered(3) on the streamed specs and pl.Buffered(1) on
    # the resident weight specs.
    mu_p, sigma_p = pl.pallas_call(
        _combiner_kernel,
        out_shape=(jax.ShapeDtypeStruct((Bp, L), f32),
                   jax.ShapeDtypeStruct((Bp, L), f32)),
        grid_spec=pltpu.PrefetchScalarGridSpec(
            num_scalar_prefetch=0,
            grid=(nsteps,),
            in_specs=[row(L), row(C), row(C),
                      res(packed["w1"]), res(packed["b1"]),
                      res(packed["w_mu"]), res(packed["b_mu"]),
                      res(packed["w_sigma"]), res(packed["b_sigma"])],
            out_specs=(row(L), row(L)),
        ),
        compiler_params=pltpu.CompilerParams(
            dimension_semantics=("parallel",),
            vmem_limit_bytes=int(min(max(vmem_est + (4 << 20), 16 << 20),
                                     48 << 20)),
        ),
    )(z, hl, hr,
      packed["w1"], packed["b1"],
      packed["w_mu"], packed["b_mu"],
      packed["w_sigma"], packed["b_sigma"])

    if Bp != B:
        return mu_p[:B], sigma_p[:B]
    return mu_p, sigma_p


# ---------------------------------------------------------------------------
# Synthetic params + pure-JAX reference
# ---------------------------------------------------------------------------
def init_params(key, latent_dim, combiner_dim):
    """Synthetic weights in (in, out) layout for x @ W + b."""
    k1, k2, k3, k4, k5, k6 = jax.random.split(key, 6)
    s1 = 1.0 / jnp.sqrt(latent_dim)
    s2 = 1.0 / jnp.sqrt(combiner_dim)
    return {
        "w1": jax.random.uniform(k1, (latent_dim, combiner_dim),
                                 jnp.float32, -s1, s1),
        "b1": jax.random.uniform(k2, (1, combiner_dim), jnp.float32, -s1, s1),
        "w_mu": jax.random.uniform(k3, (combiner_dim, latent_dim),
                                   jnp.float32, -s2, s2),
        "b_mu": jax.random.uniform(k4, (1, latent_dim), jnp.float32, -s2, s2),
        "w_sigma": jax.random.uniform(k5, (combiner_dim, latent_dim),
                                      jnp.float32, -s2, s2),
        "b_sigma": jax.random.uniform(k6, (1, latent_dim), jnp.float32, -s2, s2),
    }


def combiner_ref(z, hl, hr, p):
    h = (1.0 / 3.0) * (jnp.tanh(z @ p["w1"] + p["b1"]) + hl + hr)
    mu = h @ p["w_mu"] + p["b_mu"]
    sigma = jnp.logaddexp(h @ p["w_sigma"] + p["b_sigma"], 0.0)
    return mu, sigma


if __name__ == "__main__":
    batch = 8
    latent_dim = 32
    combiner_dim = 64

    key = jax.random.PRNGKey(0)
    kp, kz, kl, kr = jax.random.split(key, 4)

    params = init_params(kp, latent_dim, combiner_dim)
    z_t_1 = jax.random.normal(kz, (batch, latent_dim), jnp.float32)
    h_l_rnn = jax.random.normal(kl, (batch, combiner_dim), jnp.float32)
    h_r_rnn = jax.random.normal(kr, (batch, combiner_dim), jnp.float32)

    mu_ref, sigma_ref = combiner_ref(z_t_1, h_l_rnn, h_r_rnn, params)

    fwd = jax.jit(combiner_forward)

    # Bit-faithful f32 MXU path (default; use on v5e or when exactness matters).
    packed_f32 = prepack_params(params, jnp.float32)
    mu, sigma = fwd(z_t_1, h_l_rnn, h_r_rnn, packed_f32)
    jax.block_until_ready((mu, sigma))
    assert mu.shape == (batch, latent_dim) and sigma.shape == (batch, latent_dim)
    assert jnp.allclose(mu, mu_ref, atol=1e-4, rtol=1e-4)
    assert jnp.allclose(sigma, sigma_ref, atol=1e-4, rtol=1e-4)
    assert bool(jnp.all(sigma > 0))

    # bf16 MXU fast path (v6e/v7x): f32 accumulation, looser tolerance.
    packed_bf16 = prepack_params(params, jnp.bfloat16)
    mu_b, sigma_b = fwd(z_t_1, h_l_rnn, h_r_rnn, packed_bf16)
    jax.block_until_ready((mu_b, sigma_b))
    assert jnp.allclose(mu_b, mu_ref, atol=5e-2, rtol=5e-2)
    assert jnp.allclose(sigma_b, sigma_ref, atol=5e-2, rtol=5e-2)

    print("KERNEL_OK")
</pallas_src>

<mosaic_0001>
module attributes {stable_mosaic.version = 11 : i64} {
  func.func @_combiner_kernel(%arg0: i32, %arg1: memref<8x32xf32, #tpu.memory_space<vmem>>, %arg2: memref<8x64xf32, #tpu.memory_space<vmem>>, %arg3: memref<8x64xf32, #tpu.memory_space<vmem>>, %arg4: memref<32x64xf32, #tpu.memory_space<vmem>>, %arg5: memref<1x64xf32, #tpu.memory_space<vmem>>, %arg6: memref<64x32xf32, #tpu.memory_space<vmem>>, %arg7: memref<1x32xf32, #tpu.memory_space<vmem>>, %arg8: memref<64x32xf32, #tpu.memory_space<vmem>>, %arg9: memref<1x32xf32, #tpu.memory_space<vmem>>, %arg10: memref<8x32xf32, #tpu.memory_space<vmem>>, %arg11: memref<8x32xf32, #tpu.memory_space<vmem>>) attributes {dimension_semantics = [#tpu.dimension_semantics<parallel>], iteration_bounds = array<i64: 1>, scalar_prefetch = 0 : i64, scratch_operands = 0 : i64, tpu.core_type = #tpu.core_type<tc>, window_params = [{transform_indices = @transform_0, window_bounds = array<i64: 8, 32>}, {transform_indices = @transform_1, window_bounds = array<i64: 8, 64>}, {transform_indices = @transform_2, window_bounds = array<i64: 8, 64>}, {pipeline_mode = #tpu.pipeline_mode<synchronous>, transform_indices = @transform_3, window_bounds = array<i64: 32, 64>}, {pipeline_mode = #tpu.pipeline_mode<synchronous>, transform_indices = @transform_4, window_bounds = array<i64: 1, 64>}, {pipeline_mode = #tpu.pipeline_mode<synchronous>, transform_indices = @transform_5, window_bounds = array<i64: 64, 32>}, {pipeline_mode = #tpu.pipeline_mode<synchronous>, transform_indices = @transform_6, window_bounds = array<i64: 1, 32>}, {pipeline_mode = #tpu.pipeline_mode<synchronous>, transform_indices = @transform_7, window_bounds = array<i64: 64, 32>}, {pipeline_mode = #tpu.pipeline_mode<synchronous>, transform_indices = @transform_8, window_bounds = array<i64: 1, 32>}, {transform_indices = @transform_9, window_bounds = array<i64: 8, 32>}, {transform_indices = @transform_10, window_bounds = array<i64: 8, 32>}]} {
    %c0 = arith.constant 0 : index
    %c0_0 = arith.constant 0 : index
    %0 = vector.load %arg1[%c0, %c0_0] : memref<8x32xf32, #tpu.memory_space<vmem>>, vector<8x32xf32>
    %c0_1 = arith.constant 0 : index
    %c0_2 = arith.constant 0 : index
    %1 = vector.load %arg4[%c0_1, %c0_2] : memref<32x64xf32, #tpu.memory_space<vmem>>, vector<32x64xf32>
    %cst = arith.constant dense<0.000000e+00> : vector<8x64xf32>
    %2 = tpu.matmul %0, %1, %cst {dimension_numbers = #tpu.dot_dimension_numbers<[1], [0], [0], [1], [0, 0, 1, 1], [], []>} : vector<8x32xf32>, vector<32x64xf32>, vector<8x64xf32> -> vector<8x64xf32>
    %c0_3 = arith.constant 0 : index
    %c0_4 = arith.constant 0 : index
    %3 = vector.load %arg5[%c0_3, %c0_4] : memref<1x64xf32, #tpu.memory_space<vmem>>, vector<1x64xf32>
    %4 = vector.broadcast %3 : vector<1x64xf32> to vector<8x64xf32>
    %5 = arith.addf %2, %4 : vector<8x64xf32>
    %6 = math.tanh %5 : vector<8x64xf32>
    %c0_5 = arith.constant 0 : index
    %c0_6 = arith.constant 0 : index
    %7 = vector.load %arg2[%c0_5, %c0_6] : memref<8x64xf32, #tpu.memory_space<vmem>>, vector<8x64xf32>
    %8 = arith.addf %6, %7 : vector<8x64xf32>
    %c0_7 = arith.constant 0 : index
    %c0_8 = arith.constant 0 : index
    %9 = vector.load %arg3[%c0_7, %c0_8] : memref<8x64xf32, #tpu.memory_space<vmem>>, vector<8x64xf32>
    %10 = arith.addf %8, %9 : vector<8x64xf32>
    %cst_9 = arith.constant 0.333333343 : f32
    %11 = vector.broadcast %cst_9 : f32 to vector<8x64xf32>
    %12 = arith.mulf %11, %10 : vector<8x64xf32>
    %c0_10 = arith.constant 0 : index
    %c0_11 = arith.constant 0 : index
    %13 = vector.load %arg6[%c0_10, %c0_11] : memref<64x32xf32, #tpu.memory_space<vmem>>, vector<64x32xf32>
    %cst_12 = arith.constant dense<0.000000e+00> : vector<8x32xf32>
    %14 = tpu.matmul %12, %13, %cst_12 {dimension_numbers = #tpu.dot_dimension_numbers<[1], [0], [0], [1], [0, 0, 1, 1], [], []>} : vector<8x64xf32>, vector<64x32xf32>, vector<8x32xf32> -> vector<8x32xf32>
    %c0_13 = arith.constant 0 : index
    %c0_14 = arith.constant 0 : index
    %15 = vector.load %arg7[%c0_13, %c0_14] : memref<1x32xf32, #tpu.memory_space<vmem>>, vector<1x32xf32>
    %16 = vector.broadcast %15 : vector<1x32xf32> to vector<8x32xf32>
    %17 = arith.addf %14, %16 : vector<8x32xf32>
    %c0_15 = arith.constant 0 : index
    %c0_16 = arith.constant 0 : index
    %18 = vector.load %arg8[%c0_15, %c0_16] : memref<64x32xf32, #tpu.memory_space<vmem>>, vector<64x32xf32>
    %cst_17 = arith.constant dense<0.000000e+00> : vector<8x32xf32>
    %19 = tpu.matmul %12, %18, %cst_17 {dimension_numbers = #tpu.dot_dimension_numbers<[1], [0], [0], [1], [0, 0, 1, 1], [], []>} : vector<8x64xf32>, vector<64x32xf32>, vector<8x32xf32> -> vector<8x32xf32>
    %c0_18 = arith.constant 0 : index
    %c0_19 = arith.constant 0 : index
    %20 = vector.load %arg9[%c0_18, %c0_19] : memref<1x32xf32, #tpu.memory_space<vmem>>, vector<1x32xf32>
    %21 = vector.broadcast %20 : vector<1x32xf32> to vector<8x32xf32>
    %22 = arith.addf %19, %21 : vector<8x32xf32>
    %c0_20 = arith.constant 0 : index
    %c0_21 = arith.constant 0 : index
    %23 = vector.load %arg10[%c0_20, %c0_21] : memref<8x32xf32, #tpu.memory_space<vmem>>, vector<8x32xf32>
    tpu.vector_store %arg10[%c0_20, %c0_21], %17 {strides = array<i32>} : memref<8x32xf32, #tpu.memory_space<vmem>>, vector<8x32xf32>,
    %cst_22 = arith.constant 0.000000e+00 : f32
    %24 = vector.broadcast %cst_22 : f32 to vector<8x32xf32>
    %25 = arith.maximumf %22, %24 : vector<8x32xf32>
    %26 = vector.broadcast %cst_22 : f32 to vector<8x32xf32>
    %27 = arith.subf %22, %26 : vector<8x32xf32>
    %28 = arith.cmpf one, %27, %27 : vector<8x32xf32>
    %29 = vector.broadcast %cst_22 : f32 to vector<8x32xf32>
    %30 = arith.addf %22, %29 : vector<8x32xf32>
    %31 = math.absf %27 : vector<8x32xf32>
    %cst_23 = arith.constant 0.000000e+00 : f32
    %32 = vector.broadcast %cst_23 : f32 to vector<8x32xf32>
    %33 = arith.subf %32, %31 : vector<8x32xf32>
    %34 = math.exp %33 : vector<8x32xf32>
    %35 = math.log1p %34 : vector<8x32xf32>
    %36 = arith.addf %25, %35 : vector<8x32xf32>
    %37 = arith.select %28, %30, %36 : vector<8x32xi1>, vector<8x32xf32>
    %c0_24 = arith.constant 0 : index
    %c0_25 = arith.constant 0 : index
    %38 = vector.load %arg11[%c0_24, %c0_25] : memref<8x32xf32, #tpu.memory_space<vmem>>, vector<8x32xf32>
    tpu.vector_store %arg11[%c0_24, %c0_25], %37 {strides = array<i32>} : memref<8x32xf32, #tpu.memory_space<vmem>>, vector<8x32xf32>,
    return
  }
  func.func @transform_0(%arg0: i32) -> (i32, i32) {
    %c0_i32 = arith.constant 0 : i32
    %c0_i32_0 = arith.constant 0 : i32
    return %arg0, %c0_i32 : i32, i32
  }
  func.func @transform_1(%arg0: i32) -> (i32, i32) {
    %c0_i32 = arith.constant 0 : i32
    %c0_i32_0 = arith.constant 0 : i32
    return %arg0, %c0_i32 : i32, i32
  }
  func.func @transform_2(%arg0: i32) -> (i32, i32) {
    %c0_i32 = arith.constant 0 : i32
    %c0_i32_0 = arith.constant 0 : i32
    return %arg0, %c0_i32 : i32, i32
  }
  func.func @transform_3(%arg0: i32) -> (i32, i32) {
    %c0_i32 = arith.constant 0 : i32
    %c0_i32_0 = arith.constant 0 : i32
    %c0_i32_1 = arith.constant 0 : i32
    return %c0_i32, %c0_i32_0 : i32, i32
  }
  func.func @transform_4(%arg0: i32) -> (i32, i32) {
    %c0_i32 = arith.constant 0 : i32
    %c0_i32_0 = arith.constant 0 : i32
    %c0_i32_1 = arith.constant 0 : i32
    return %c0_i32, %c0_i32_0 : i32, i32
  }
  func.func @transform_5(%arg0: i32) -> (i32, i32) {
    %c0_i32 = arith.constant 0 : i32
    %c0_i32_0 = arith.constant 0 : i32
    %c0_i32_1 = arith.constant 0 : i32
    return %c0_i32, %c0_i32_0 : i32, i32
  }
  func.func @transform_6(%arg0: i32) -> (i32, i32) {
    %c0_i32 = arith.constant 0 : i32
    %c0_i32_0 = arith.constant 0 : i32
    %c0_i32_1 = arith.constant 0 : i32
    return %c0_i32, %c0_i32_0 : i32, i32
  }
  func.func @transform_7(%arg0: i32) -> (i32, i32) {
    %c0_i32 = arith.constant 0 : i32
    %c0_i32_0 = arith.constant 0 : i32
    %c0_i32_1 = arith.constant 0 : i32
    return %c0_i32, %c0_i32_0 : i32, i32
  }
  func.func @transform_8(%arg0: i32) -> (i32, i32) {
    %c0_i32 = arith.constant 0 : i32
    %c0_i32_0 = arith.constant 0 : i32
    %c0_i32_1 = arith.constant 0 : i32
    return %c0_i32, %c0_i32_0 : i32, i32
  }
  func.func @transform_9(%arg0: i32) -> (i32, i32) {
    %c0_i32 = arith.constant 0 : i32
    %c0_i32_0 = arith.constant 0 : i32
    return %arg0, %c0_i32 : i32, i32
  }
  func.func @transform_10(%arg0: i32) -> (i32, i32) {
    %c0_i32 = arith.constant 0 : i32
    %c0_i32_0 = arith.constant 0 : i32
    return %arg0, %c0_i32 : i32, i32
  }
}

</mosaic_0001>

<llo_original>
// kernel: combiner_forward.1
$region0: #{combiner_forward.1}
  #allocation0 [shape = 'u32[]', space=smem, size = 0x4, offset = 0x4, fixed_abs, tag = 'smem constant byte address 0x4 - core index']
  #allocation1 [shape = 'u32[144,128]{1,0:T(1,128)}', space=vmem, size = 0x12000, scoped, tag = 'internal scratch']
  %s0 = inlined_call_operand.vmem [shape: f32[8,32], index: 0, kind: input, shape index: {}]
  %s1 = inlined_call_operand.vmem [shape: f32[8,64], index: 1, kind: input, shape index: {}]
  %s2 = inlined_call_operand.vmem [shape: f32[8,64], index: 2, kind: input, shape index: {}]
  %s3 = inlined_call_operand.vmem [shape: f32[32,64], index: 3, kind: input, shape index: {}]
  %s4 = inlined_call_operand.vmem [shape: f32[1,64], index: 4, kind: input, shape index: {}]
  %s5 = inlined_call_operand.vmem [shape: f32[64,32], index: 5, kind: input, shape index: {}]
  %s6 = inlined_call_operand.vmem [shape: f32[1,32], index: 6, kind: input, shape index: {}]
  %s7 = inlined_call_operand.vmem [shape: f32[64,32], index: 7, kind: input, shape index: {}]
  %s8 = inlined_call_operand.vmem [shape: f32[1,32], index: 8, kind: input, shape index: {}]
  %s9 = inlined_call_operand.hbm [shape: f32[8,32], index: 9, kind: output, shape index: {0}]
  %s10 = inlined_call_operand.hbm [shape: f32[8,32], index: 10, kind: output, shape index: {1}]
  %11 = xla_tuple %s9, %s10
  %s12 = sld [smem:[#allocation0]]
  $region54: #{combiner_forward.1} parent=0
    _
  %s14 = ssub.s32 1, %s12
  %s15 = scalar_select 0, %s14, %s12
  $region1: #{combiner_forward.1} parent=0
    #allocation2 [shape = 'u8[4096]{0}', space=vmem, size = 0x1000, scoped, tag = 'output window, operand 0, single buffered']
    #allocation3 [shape = 's32[1]{0}', space=sflag, size = 0x4, scoped, tag = 'scoped memory for combiner_forward.1']
    #allocation4 [shape = 'u8[4096]{0}', space=vmem, size = 0x1000, scoped, tag = 'output window, operand 1, single buffered']
    #allocation5 [shape = 's32[1]{0}', space=sflag, size = 0x4, scoped, tag = 'scoped memory for combiner_forward.1']
    %16 = vsyncpa [#allocation3], 0
    %17 = vsyncpa [#allocation5], 0
    // Predicated region
    $region2: #{combiner_forward.1} parent=1 // pred_check
      _
    $region3: #{combiner_forward.1} parent=1 // pred_check_branch
      %19 = sbr.rel (0) target = $region5
    $region4: #{combiner_forward.1} parent=1 // pred_region
      _
    $region5: #{combiner_forward.1} parent=1 // pred_fallthru
      _
    // Predicated region
    $region6: #{combiner_forward.1} parent=1 // pred_check
      _
    $region7: #{combiner_forward.1} parent=1 // pred_check_branch
      %21 = sbr.rel (0) target = $region9
    $region8: #{combiner_forward.1} parent=1 // pred_region
      _
    $region9: #{combiner_forward.1} parent=1 // pred_fallthru
      _
    // Predicated region
    $region10: #{combiner_forward.1} parent=1 // pred_check
      _
    $region11: #{combiner_forward.1} parent=1 // pred_check_branch
      %23 = sbr.rel (0) target = $region13
    $region12: #{combiner_forward.1} parent=1 // pred_region
      _
    $region13: #{combiner_forward.1} parent=1 // pred_fallthru
      _
    // Predicated region
    $region14: #{combiner_forward.1} parent=1 // pred_check
      _
    $region15: #{combiner_forward.1} parent=1 // pred_check_branch
      %25 = sbr.rel (0) target = $region17
    $region16: #{combiner_forward.1} parent=1 // pred_region
      _
    $region17: #{combiner_forward.1} parent=1 // pred_fallthru
      _
    // Predicated region
    $region18: #{combiner_forward.1} parent=1 // pred_check
      _
    $region19: #{combiner_forward.1} parent=1 // pred_check_branch
      %27 = sbr.rel (0) target = $region21
    $region20: #{combiner_forward.1} parent=1 // pred_region
      _
    $region21: #{combiner_forward.1} parent=1 // pred_fallthru
      _
    // Predicated region
    $region22: #{combiner_forward.1} parent=1 // pred_check
      _
    $region23: #{combiner_forward.1} parent=1 // pred_check_branch
      %29 = sbr.rel (0) target = $region25
    $region24: #{combiner_forward.1} parent=1 // pred_region
      _
    $region25: #{combiner_forward.1} parent=1 // pred_fallthru
      _
    // Predicated region
    $region26: #{combiner_forward.1} parent=1 // pred_check
      _
    $region27: #{combiner_forward.1} parent=1 // pred_check_branch
      %31 = sbr.rel (0) target = $region29
    $region28: #{combiner_forward.1} parent=1 // pred_region
      _
    $region29: #{combiner_forward.1} parent=1 // pred_fallthru
      _
    // Predicated region
    $region30: #{combiner_forward.1} parent=1 // pred_check
      _
    $region31: #{combiner_forward.1} parent=1 // pred_check_branch
      %33 = sbr.rel (0) target = $region33
    $region32: #{combiner_forward.1} parent=1 // pred_region
      _
    $region33: #{combiner_forward.1} parent=1 // pred_fallthru
      _
    // Predicated region
    $region34: #{combiner_forward.1} parent=1 // pred_check
      _
    $region35: #{combiner_forward.1} parent=1 // pred_check_branch
      %35 = sbr.rel (0) target = $region37
    $region36: #{combiner_forward.1} parent=1 // pred_region
      _
    $region37: #{combiner_forward.1} parent=1 // pred_fallthru
      _
    %v36 = vld [vmem:[%s0] sm:$0xff]
    %v37 = vld [vmem:[%s3] sm:$0xff]
    %v38 = vld [vmem:[%s3 + $0x8] sm:$0xff]
    %v39 = vld [vmem:[%s3 + $0x10] sm:$0xff]
    %v40 = vld [vmem:[%s3 + $0x18] sm:$0xff]
    %v41 = vld [vmem:[%s4] sm:$0x1]
    %v43 = vlaneseq
    %v44 = vshrl.u32 %v43, 7
    %v45 = vsub.s32 0, %v44
    %v46 = vrot.slane %v41, %v45
    %vm48 = vcmask 261120
    %v50 = vsel %vm48, %v36, 0
    %52 = vmatprep.subr.mxu0 0.0
    %53 = vmatpush1.msra.mxu0 0.0
    %54 = vmatprep.subr.mxu0 0.0
    %55 = vmatpush1.msra.mxu0 0.0
    %56 = vmatprep.subr.mxu0 0.0
    %57 = vmatpush1.msra.mxu0 0.0
    %58 = vmatprep.subr.mxu0 0.0
    %59 = vmatpush1.msra.mxu0 0.0
    %60 = vmatprep.subr.mxu0 0.0
    %61 = vmatpush1.msra.mxu0 0.0
    %62 = vmatprep.subr.mxu0 0.0
    %63 = vmatpush1.msra.mxu0 0.0
    %64 = vmatprep.subr.mxu0 0.0
    %65 = vmatpush1.msra.mxu0 0.0
    %66 = vmatprep.subr.mxu0 0.0
    %67 = vmatpush1.msra.mxu0 0.0
    %68 = vmatprep.subr.mxu0 0.0
    %69 = vmatpush1.msra.mxu0 0.0
    %70 = vmatprep.subr.mxu0 0.0
    %71 = vmatpush1.msra.mxu0 0.0
    %72 = vmatprep.subr.mxu0 0.0
    %73 = vmatpush1.msra.mxu0 0.0
    %74 = vmatprep.subr.mxu0 0.0
    %75 = vmatpush1.msra.mxu0 0.0
    %76 = vmatprep.subr.mxu0 0.0
    %77 = vmatpush1.msra.mxu0 %v40
    %78 = vmatprep.subr.mxu0 0.0
    %79 = vmatpush1.msra.mxu0 %v39
    %80 = vmatprep.subr.mxu0 0.0
    %81 = vmatpush1.msra.mxu0 %v38
    %82 = vmatprep.subr.mxu0 0.0
    %83 = vmatpush1.msra.mxu0 %v37
    %84 = vmatprep.subr.mxu0 0.0
    %85 = vmatpush2.msra.mxu0 0.0
    %86 = vmatprep.subr.mxu0 0.0
    %87 = vmatpush2.msra.mxu0 0.0
    %88 = vmatprep.subr.mxu0 0.0
    %89 = vmatpush2.msra.mxu0 0.0
    %90 = vmatprep.subr.mxu0 0.0
    %91 = vmatpush2.msra.mxu0 0.0
    %92 = vmatprep.subr.mxu0 0.0
    %93 = vmatpush2.msra.mxu0 0.0
    %94 = vmatprep.subr.mxu0 0.0
    %95 = vmatpush2.msra.mxu0 0.0
    %96 = vmatprep.subr.mxu0 0.0
    %97 = vmatpush2.msra.mxu0 0.0
    %98 = vmatprep.subr.mxu0 0.0
    %99 = vmatpush2.msra.mxu0 0.0
    %100 = vmatprep.subr.mxu0 0.0
    %101 = vmatpush2.msra.mxu0 0.0
    %102 = vmatprep.subr.mxu0 0.0
    %103 = vmatpush2.msra.mxu0 0.0
    %104 = vmatprep.subr.mxu0 0.0
    %105 = vmatpush2.msra.mxu0 0.0
    %106 = vmatprep.subr.mxu0 0.0
    %107 = vmatpush2.msra.mxu0 0.0
    %108 = vmatprep.subr.mxu0 0.0
    %109 = vmatpush2.msra.mxu0 0.0
    %110 = vmatprep.subr.mxu0 0.0
    %111 = vmatpush2.msra.mxu0 0.0
    %112 = vmatprep.subr.mxu0 0.0
    %113 = vmatpush2.msra.mxu0 0.0
    %114 = vmatprep.subr.mxu0 0.0
    %115 = vmatpush2.msra.mxu0 0.0
    %116 = vmatprep.mubr.f32.mxu0 0.0
    %117 = vmatmul.mubr.f32.gmra.mxu0 %v50
    %v118 = vpop.f32.mrf.mxu0
    %v119 = vadd.f32 %v46, %v118
    %v120 = vpop.f32.mrf.mxu0
    %121 = vdwg.mxu0
    %v122 = vtanh.pop %v119
    %v123 = vld [vmem:[%s1] sm:$0xff]
    %v124 = vadd.f32 %v122, %v123
    %v125 = vld [vmem:[%s2] sm:$0xff]
    %v126 = vadd.f32 %v124, %v125
    %v127 = vmul.f32 %v126, 0.33333334
    %v128 = vld [vmem:[%s5] sm:$0xff]
    %v129 = vld [vmem:[%s5 + $0x8] sm:$0xff]
    %v130 = vld [vmem:[%s5 + $0x10] sm:$0xff]
    %v131 = vld [vmem:[%s5 + $0x18] sm:$0xff]
    %v132 = vld [vmem:[%s5 + $0x20] sm:$0xff]
    %v133 = vld [vmem:[%s5 + $0x28] sm:$0xff]
    %v134 = vld [vmem:[%s5 + $0x30] sm:$0xff]
    %v135 = vld [vmem:[%s5 + $0x38] sm:$0xff]
    %v136 = vld [vmem:[%s6] sm:$0x1]
    %v138 = vlaneseq
    %v139 = vshrl.u32 %v138, 7
    %v140 = vsub.s32 0, %v139
    %v141 = vrot.slane %v136, %v140
    %vm143 = vcmask 523264
    %v145 = vsel %vm143, %v127, 0
    %147 = vmatprep.subr.mxu0 0.0
    %148 = vmatpush1.msra.mxu0 0.0
    %149 = vmatprep.subr.mxu0 0.0
    %150 = vmatpush1.msra.mxu0 0.0
    %151 = vmatprep.subr.mxu0 0.0
    %152 = vmatpush1.msra.mxu0 0.0
    %153 = vmatprep.subr.mxu0 0.0
    %154 = vmatpush1.msra.mxu0 0.0
    %155 = vmatprep.subr.mxu0 0.0
    %156 = vmatpush1.msra.mxu0 0.0
    %157 = vmatprep.subr.mxu0 0.0
    %158 = vmatpush1.msra.mxu0 0.0
    %159 = vmatprep.subr.mxu0 0.0
    %160 = vmatpush1.msra.mxu0 0.0
    %161 = vmatprep.subr.mxu0 0.0
    %162 = vmatpush1.msra.mxu0 0.0
    %163 = vmatprep.subr.mxu0 0.0
    %164 = vmatpush1.msra.mxu0 %v135
    %165 = vmatprep.subr.mxu0 0.0
    %166 = vmatpush1.msra.mxu0 %v134
    %167 = vmatprep.subr.mxu0 0.0
    %168 = vmatpush1.msra.mxu0 %v133
    %169 = vmatprep.subr.mxu0 0.0
    %170 = vmatpush1.msra.mxu0 %v132
    %171 = vmatprep.subr.mxu0 0.0
    %172 = vmatpush1.msra.mxu0 %v131
    %173 = vmatprep.subr.mxu0 0.0
    %174 = vmatpush1.msra.mxu0 %v130
    %175 = vmatprep.subr.mxu0 0.0
    %176 = vmatpush1.msra.mxu0 %v129
    %177 = vmatprep.subr.mxu0 0.0
    %178 = vmatpush1.msra.mxu0 %v128
    %179 = vmatprep.subr.mxu0 0.0
    %180 = vmatpush2.msra.mxu0 0.0
    %181 = vmatprep.subr.mxu0 0.0
    %182 = vmatpush2.msra.mxu0 0.0
    %183 = vmatprep.subr.mxu0 0.0
    %184 = vmatpush2.msra.mxu0 0.0
    %185 = vmatprep.subr.mxu0 0.0
    %186 = vmatpush2.msra.mxu0 0.0
    %187 = vmatprep.subr.mxu0 0.0
    %188 = vmatpush2.msra.mxu0 0.0
    %189 = vmatprep.subr.mxu0 0.0
    %190 = vmatpush2.msra.mxu0 0.0
    %191 = vmatprep.subr.mxu0 0.0
    %192 = vmatpush2.msra.mxu0 0.0
    %193 = vmatprep.subr.mxu0 0.0
    %194 = vmatpush2.msra.mxu0 0.0
    %195 = vmatprep.subr.mxu0 0.0
    %196 = vmatpush2.msra.mxu0 0.0
    %197 = vmatprep.subr.mxu0 0.0
    %198 = vmatpush2.msra.mxu0 0.0
    %199 = vmatprep.subr.mxu0 0.0
    %200 = vmatpush2.msra.mxu0 0.0
    %201 = vmatprep.subr.mxu0 0.0
    %202 = vmatpush2.msra.mxu0 0.0
    %203 = vmatprep.subr.mxu0 0.0
    %204 = vmatpush2.msra.mxu0 0.0
    %205 = vmatprep.subr.mxu0 0.0
    %206 = vmatpush2.msra.mxu0 0.0
    %207 = vmatprep.subr.mxu0 0.0
    %208 = vmatpush2.msra.mxu0 0.0
    %209 = vmatprep.subr.mxu0 0.0
    %210 = vmatpush2.msra.mxu0 0.0
    %211 = vmatprep.mubr.f32.mxu0 0.0
    %212 = vmatmul.mubr.f32.gmra.mxu0 %v145
    %v213 = vpop.f32.mrf.mxu0
    %v214 = vadd.f32 %v141, %v213
    %v215 = vpop.f32.mrf.mxu0
    %216 = vdwg.mxu0
    %v217 = vld [vmem:[%s7] sm:$0xff]
    %v218 = vld [vmem:[%s7 + $0x8] sm:$0xff]
    %v219 = vld [vmem:[%s7 + $0x10] sm:$0xff]
    %v220 = vld [vmem:[%s7 + $0x18] sm:$0xff]
    %v221 = vld [vmem:[%s7 + $0x20] sm:$0xff]
    %v222 = vld [vmem:[%s7 + $0x28] sm:$0xff]
    %v223 = vld [vmem:[%s7 + $0x30] sm:$0xff]
    %v224 = vld [vmem:[%s7 + $0x38] sm:$0xff]
    %v225 = vld [vmem:[%s8] sm:$0x1]
    %v227 = vlaneseq
    %v228 = vshrl.u32 %v227, 7
    %v229 = vsub.s32 0, %v228
    %v230 = vrot.slane %v225, %v229
    %232 = vmatprep.subr.mxu0 0.0
    %233 = vmatpush1.msra.mxu0 0.0
    %234 = vmatprep.subr.mxu0 0.0
    %235 = vmatpush1.msra.mxu0 0.0
    %236 = vmatprep.subr.mxu0 0.0
    %237 = vmatpush1.msra.mxu0 0.0
    %238 = vmatprep.subr.mxu0 0.0
    %239 = vmatpush1.msra.mxu0 0.0
    %240 = vmatprep.subr.mxu0 0.0
    %241 = vmatpush1.msra.mxu0 0.0
    %242 = vmatprep.subr.mxu0 0.0
    %243 = vmatpush1.msra.mxu0 0.0
    %244 = vmatprep.subr.mxu0 0.0
    %245 = vmatpush1.msra.mxu0 0.0
    %246 = vmatprep.subr.mxu0 0.0
    %247 = vmatpush1.msra.mxu0 0.0
    %248 = vmatprep.subr.mxu0 0.0
    %249 = vmatpush1.msra.mxu0 %v224
    %250 = vmatprep.subr.mxu0 0.0
    %251 = vmatpush1.msra.mxu0 %v223
    %252 = vmatprep.subr.mxu0 0.0
    %253 = vmatpush1.msra.mxu0 %v222
    %254 = vmatprep.subr.mxu0 0.0
    %255 = vmatpush1.msra.mxu0 %v221
    %256 = vmatprep.subr.mxu0 0.0
    %257 = vmatpush1.msra.mxu0 %v220
    %258 = vmatprep.subr.mxu0 0.0
    %259 = vmatpush1.msra.mxu0 %v219
    %260 = vmatprep.subr.mxu0 0.0
    %261 = vmatpush1.msra.mxu0 %v218
    %262 = vmatprep.subr.mxu0 0.0
    %263 = vmatpush1.msra.mxu0 %v217
    %264 = vmatprep.subr.mxu0 0.0
    %265 = vmatpush2.msra.mxu0 0.0
    %266 = vmatprep.subr.mxu0 0.0
    %267 = vmatpush2.msra.mxu0 0.0
    %268 = vmatprep.subr.mxu0 0.0
    %269 = vmatpush2.msra.mxu0 0.0
    %270 = vmatprep.subr.mxu0 0.0
    %271 = vmatpush2.msra.mxu0 0.0
    %272 = vmatprep.subr.mxu0 0.0
    %273 = vmatpush2.msra.mxu0 0.0
    %274 = vmatprep.subr.mxu0 0.0
    %275 = vmatpush2.msra.mxu0 0.0
    %276 = vmatprep.subr.mxu0 0.0
    %277 = vmatpush2.msra.mxu0 0.0
    %278 = vmatprep.subr.mxu0 0.0
    %279 = vmatpush2.msra.mxu0 0.0
    %280 = vmatprep.subr.mxu0 0.0
    %281 = vmatpush2.msra.mxu0 0.0
    %282 = vmatprep.subr.mxu0 0.0
    %283 = vmatpush2.msra.mxu0 0.0
    %284 = vmatprep.subr.mxu0 0.0
    %285 = vmatpush2.msra.mxu0 0.0
    %286 = vmatprep.subr.mxu0 0.0
    %287 = vmatpush2.msra.mxu0 0.0
    %288 = vmatprep.subr.mxu0 0.0
    %289 = vmatpush2.msra.mxu0 0.0
    %290 = vmatprep.subr.mxu0 0.0
    %291 = vmatpush2.msra.mxu0 0.0
    %292 = vmatprep.subr.mxu0 0.0
    %293 = vmatpush2.msra.mxu0 0.0
    %294 = vmatprep.subr.mxu0 0.0
    %295 = vmatpush2.msra.mxu0 0.0
    %296 = vmatprep.mubr.f32.mxu0 0.0
    %297 = vmatmul.mubr.f32.gmra.mxu0 %v145
    %v298 = vpop.f32.mrf.mxu0
    %v299 = vadd.f32 %v230, %v298
    %v300 = vpop.f32.mrf.mxu0
    %301 = vdwg.mxu0
    %302 = vst.msk [vmem:[#allocation2] sm:$0xff] %vm48, %v214
    %v303 = vmax.f32 %v299, 0.0
    %vm304 = vcmp.ne.f32.partialorder %v299, %v299
    %v305 = vadd.f32 %v299, 0.0
    %v306 = vand.u32 2147483647, %v299
    %v307 = vsub.f32 0.0, %v306
    %v308 = vmul.f32 %v307, 1.442695
    %v309 = vpow.pop %v308
    %v310 = vadd.f32 %v309, 1.0
    %v311 = vlog2.pop %v310
    %v312 = vmul.f32 %v311, 0.6931472
    %v313 = vmul.f32 -0.5, %v309
    %v314 = vadd.f32 %v313, 1.0
    %v315 = vmul.f32 %v314, %v309
    %v316 = vand.u32 2147483647, %v309
    %vm317 = vcmp.lt.f32.partialorder %v316, 0.0004427343
    %v318 = vsel %vm317, %v315, %v312
    %v319 = vadd.f32 %v303, %v318
    %v320 = vsel %vm304, %v305, %v319
    %321 = vst.msk [vmem:[#allocation4] sm:$0xff] %vm48, %v320
    // Predicated region
    $region38: #{combiner_forward.1} parent=1 // pred_check
      _
    $region39: #{combiner_forward.1} parent=1 // pred_check_branch
      %323 = sbr.rel (0) target = $region41
    $region40: #{combiner_forward.1} parent=1 // pred_region
      %s325 = ssub.s32 128, 128
      %326 = vsyncadd [#allocation3], %s325
      %s328 = sshll.u32 [#allocation2], 4
      %s329 = int_to_ptr.vmem [resolvable:$true] %s328
      %331 = dma.vmem_to_hbm [thread:$0]  %s329, 128, %s9, [#allocation3]
    $region41: #{combiner_forward.1} parent=1 // pred_fallthru
      _
    // Predicated region
    $region42: #{combiner_forward.1} parent=1 // pred_check
      _
    $region43: #{combiner_forward.1} parent=1 // pred_check_branch
      %333 = sbr.rel (0) target = $region45
    $region44: #{combiner_forward.1} parent=1 // pred_region
      %s335 = ssub.s32 128, 128
      %336 = vsyncadd [#allocation5], %s335
      %s338 = sshll.u32 [#allocation4], 4
      %s339 = int_to_ptr.vmem [resolvable:$true] %s338
      %341 = dma.vmem_to_hbm [thread:$0]  %s339, 128, %s10, [#allocation5]
    $region45: #{combiner_forward.1} parent=1 // pred_fallthru
      _
    // Predicated region
    $region46: #{combiner_forward.1} parent=1 // pred_check
      _
    $region47: #{combiner_forward.1} parent=1 // pred_check_branch
      %343 = sbr.rel (0) target = $region49
    $region48: #{combiner_forward.1} parent=1 // pred_region
      %344 = dma.done [#allocation3], 128
    $region49: #{combiner_forward.1} parent=1 // pred_fallthru
      _
    // Predicated region
    $region50: #{combiner_forward.1} parent=1 // pred_check
      _
    $region51: #{combiner_forward.1} parent=1 // pred_check_branch
      %346 = sbr.rel (0) target = $region53
    $region52: #{combiner_forward.1} parent=1 // pred_region
      %347 = dma.done [#allocation5], 128
    $region53: #{combiner_forward.1} parent=1 // pred_fallthru
      _
    %348 = vsyncpa [#allocation3], 1
    %349 = vsyncpa [#allocation5], 1

</llo_original>
